<compile_context>
chip_gen: v5e
topology: v5e:2x2
jax: 0.10.0
libtpu: 0.0.40
codegen_flags: <defaults>
</compile_context>

<pallas_src>
import functools

import jax
import jax.numpy as jnp
from jax import lax
from jax.experimental import pallas as pl
from jax.experimental.pallas import tpu as pltpu

_EPS = 1e-12  # F.normalize eps


# ----------------------------------------------------------------------------
# sizing helpers
# ----------------------------------------------------------------------------
def _round_up(x, m):
    return ((x + m - 1) // m) * m


def _sublane_multiple(dtype):
    """Row-tile granularity: 8 for f32, 16 for bf16, 32 for int8/fp8."""
    return max(8, 32 // jnp.dtype(dtype).itemsize)


def _vmem_limit_bytes():
    """Generation-aware scoped-VMEM request (v5e/v6e: 128 MiB phys, v7x: 64)."""
    cap = 64 << 20
    try:
        cap = int(pltpu.get_tpu_info().vmem_capacity_bytes)
    except Exception:
        pass
    return int(min((cap * 3) // 4, 100 << 20))


def _largest_tile(batch, mult, cap, fits):
    """Largest row tile (multiple of `mult`, <= cap, <= padded batch) that
    passes the VMEM-footprint predicate `fits(t)`."""
    limit = min(cap, _round_up(batch, mult))
    t = max(mult, (limit // mult) * mult)
    while t > mult and not fits(t):
        t -= mult
    return t


def _pad_rows(x, rows):
    if x.shape[0] == rows:
        return x
    return jnp.pad(x, ((0, rows - x.shape[0]), (0, 0)))


# ----------------------------------------------------------------------------
# kernels
# ----------------------------------------------------------------------------
def _prep_kernel(q_ref, p_ref, qinv_ref, pos_ref):
    """Row tile: inverse L2 norm of q rows + rowwise cosine similarity pos.

    Only tiny (tb, 1) vectors go back to HBM — no normalized-embedding
    writeback.  rsqrt runs on the EUP (free bundle slot)."""
    q = q_ref[...].astype(jnp.float32)
    p = p_ref[...].astype(jnp.float32)
    # F.normalize(x, 2, dim=1) == x / max(||x||, eps); rsqrt(max(ss, eps^2))
    # is the same clamp on the EUP.
    q_inv = lax.rsqrt(jnp.maximum(jnp.sum(q * q, axis=1, keepdims=True), _EPS * _EPS))
    p_inv = lax.rsqrt(jnp.maximum(jnp.sum(p * p, axis=1, keepdims=True), _EPS * _EPS))
    qinv_ref[...] = q_inv
    pos_ref[...] = jnp.sum(q * p, axis=1, keepdims=True) * q_inv * p_inv


def _in_batch_kernel(qinv_ref, pos_ref, q_ref, p_ref, o_ref, acc_ref, *,
                     margin, batch, tq, tp, matmul_in_bf16):
    """grid = (q row tiles [parallel], p col tiles [arbitrary, reduction]).

    Inner step: MXU contraction on raw tiles + broadcast scaling + hinge,
    accumulated elementwise into a VMEM scratch.  The XLU reduce and the
    lane-sparse scalar store happen only in the j==last epilogue."""
    i = pl.program_id(0)
    j = pl.program_id(1)

    @pl.when(j == 0)
    def _():
        acc_ref[...] = jnp.zeros_like(acc_ref)

    q = q_ref[...].astype(jnp.float32)           # resident per row tile
    p = p_ref[...].astype(jnp.float32)           # streamed
    # Recompute p's inverse norm from the tile we already hold (avoids a
    # lane-transposed (1, B) carry); hides under the MXU.
    p_inv = lax.rsqrt(jnp.maximum(jnp.sum(p * p, axis=1, keepdims=True), _EPS * _EPS))
    pn = p * p_inv
    if matmul_in_bf16:
        qm = q.astype(jnp.bfloat16)
        pm = pn.astype(jnp.bfloat16)
    else:
        qm = q
        pm = pn
    # q @ pn^T expressed as a contraction -> straight into the MXU, no XLU
    # transpose of the RHS tile.
    sim = lax.dot_general(qm, pm,
                          dimension_numbers=(((1,), (1,)), ((), ())),
                          preferred_element_type=jnp.float32)   # [tq, tp] f32
    sim = sim * qinv_ref[...]                     # scale rows by q inverse norm
    hinge = jnp.maximum(margin - pos_ref[...] + sim, 0.0)

    # Only tiles that contain the diagonal or padded rows/cols pay for masking.
    needs_mask = jnp.logical_or(
        jnp.logical_or(i == j, (i + 1) * tq > batch), (j + 1) * tp > batch)

    @pl.when(needs_mask)
    def _():
        row = lax.broadcasted_iota(jnp.int32, (tq, tp), 0) + i * tq
        col = lax.broadcasted_iota(jnp.int32, (tq, tp), 1) + j * tp
        keep = jnp.logical_and(jnp.logical_and(row != col, row < batch),
                               col < batch)
        acc_ref[...] += jnp.where(keep, hinge, 0.0)

    @pl.when(jnp.logical_not(needs_mask))
    def _():
        acc_ref[...] += hinge

    @pl.when(j == pl.num_programs(1) - 1)
    def _():
        # NOTE: B == 1 gives 0/0 = NaN, matching torch (mean of empty tensor).
        o_ref[...] = jnp.zeros_like(o_ref)
        o_ref[0, 0] = jnp.sum(acc_ref[...]) / float(batch * (batch - 1))


def _explicit_neg_kernel(q_ref, p_ref, n_ref, o_ref, *, margin, batch, tb):
    """Row tile: normalize all three streams, rowwise dots, hinge, partial."""
    i = pl.program_id(0)
    q = q_ref[...].astype(jnp.float32)
    p = p_ref[...].astype(jnp.float32)
    n = n_ref[...].astype(jnp.float32)
    q = q * lax.rsqrt(jnp.maximum(jnp.sum(q * q, axis=1, keepdims=True), _EPS * _EPS))
    p = p * lax.rsqrt(jnp.maximum(jnp.sum(p * p, axis=1, keepdims=True), _EPS * _EPS))
    n = n * lax.rsqrt(jnp.maximum(jnp.sum(n * n, axis=1, keepdims=True), _EPS * _EPS))

    pos = jnp.sum(q * p, axis=1, keepdims=True)
    neg = jnp.sum(q * n, axis=1, keepdims=True)
    hinge = jnp.maximum(margin - pos + neg, 0.0)          # (tb, 1)

    row = lax.broadcasted_iota(jnp.int32, (tb, 1), 0) + i * tb
    hinge = jnp.where(row < batch, hinge, 0.0)            # drop padded rows

    o_ref[...] = jnp.zeros_like(o_ref)
    o_ref[0, 0] = jnp.sum(hinge) / float(batch)


# ----------------------------------------------------------------------------
# wrapper
# ----------------------------------------------------------------------------
def contrastive_loss(query_emb, pos_emb, neg_emb=None, margin=0.5,
                     matmul_in_bf16=False):
    """Pallas implementation of ContrastiveLoss.forward. Returns scalar f32."""
    B, D = query_emb.shape
    dtype = query_emb.dtype
    isz = jnp.dtype(dtype).itemsize
    mult = _sublane_multiple(dtype)
    vmem_limit = _vmem_limit_bytes()
    budget = (vmem_limit * 3) // 4          # headroom for compiler internals
    mm_bf16 = bool(matmul_in_bf16) or dtype == jnp.bfloat16

    if neg_emb is None:
        # ---- in-batch negatives ---------------------------------------------
        # Larger q tiles help the HBM-bound regime on v5e/v6e (128 MiB VMEM);
        # v7x (64 MiB VMEM, 3.2 TB/s) is already MXU-bound at ~256-512.
        cap2 = 1024 if vmem_limit >= (72 << 20) else 512
        tq = _largest_tile(
            B, mult, cap2,
            lambda t: (4 * t * D * isz          # q + p tiles, double-buffered
                       + 4 * 2 * t * 4          # qinv + pos blocks (f32)
                       + t * t * 4              # acc scratch
                       + 2 * 8 * 128 * 4) <= budget)
        b_pad = _round_up(B, tq)
        nq = b_pad // tq
        q = _pad_rows(query_emb, b_pad)
        p = _pad_rows(pos_emb, b_pad)

        # ---- pass 1: inverse norms + pos_sim only (no qn/pn writeback) ------
        row_spec = pl.BlockSpec((tq, D), lambda i: (i, 0))
        col1_spec = pl.BlockSpec((tq, 1), lambda i: (i, 0))
        qinv, pos = pl.pallas_call(
            _prep_kernel,
            grid=(nq,),
            in_specs=[row_spec, row_spec],
            out_specs=[col1_spec, col1_spec],
            out_shape=(jax.ShapeDtypeStruct((b_pad, 1), jnp.float32),
                       jax.ShapeDtypeStruct((b_pad, 1), jnp.float32)),
            compiler_params=pltpu.CompilerParams(
                dimension_semantics=("parallel",),
                vmem_limit_bytes=vmem_limit),
        )(q, p)

        # ---- pass 2: tiled B x B hinge reduction on the MXU ------------------
        kernel = functools.partial(_in_batch_kernel, margin=float(margin),
                                   batch=B, tq=tq, tp=tq,
                                   matmul_in_bf16=mm_bf16)
        partials = pl.pallas_call(
            kernel,
            grid=(nq, nq),
            in_specs=[pl.BlockSpec((tq, 1), lambda i, j: (i, 0)),   # qinv
                      pl.BlockSpec((tq, 1), lambda i, j: (i, 0)),   # pos
                      pl.BlockSpec((tq, D), lambda i, j: (i, 0)),   # q (resident)
                      pl.BlockSpec((tq, D), lambda i, j: (j, 0))],  # p (streamed)
            # one (8,128)-aligned partial block per q-row tile -> megacore safe
            out_specs=pl.BlockSpec((8, 128), lambda i, j: (i, 0)),
            out_shape=jax.ShapeDtypeStruct((nq * 8, 128), jnp.float32),
            scratch_shapes=[pltpu.VMEM((tq, tq), jnp.float32)],
            compiler_params=pltpu.CompilerParams(
                dimension_semantics=("parallel", "arbitrary"),
                vmem_limit_bytes=vmem_limit),
        )(qinv, pos, q, p)
        return jnp.sum(partials)

    # ---- explicit negatives: HBM-bandwidth-bound row-tiled pass --------------
    tb = _largest_tile(
        B, mult, 1024,
        lambda t: (6 * t * D * isz + 2 * 8 * 128 * 4) <= budget)
    b_pad = _round_up(B, tb)
    nb = b_pad // tb
    q = _pad_rows(query_emb, b_pad)
    p = _pad_rows(pos_emb, b_pad)
    n = _pad_rows(neg_emb, b_pad)

    kernel = functools.partial(_explicit_neg_kernel, margin=float(margin),
                               batch=B, tb=tb)
    row_spec = pl.BlockSpec((tb, D), lambda i: (i, 0))
    partials = pl.pallas_call(
        kernel,
        grid=(nb,),
        in_specs=[row_spec, row_spec, row_spec],
        out_specs=pl.BlockSpec((8, 128), lambda i: (i, 0)),
        out_shape=jax.ShapeDtypeStruct((nb * 8, 128), jnp.float32),
        compiler_params=pltpu.CompilerParams(
            dimension_semantics=("parallel",),
            vmem_limit_bytes=vmem_limit),
    )(q, p, n)
    return jnp.sum(partials)


# ----------------------------------------------------------------------------
# pure-JAX reference (mirrors the PyTorch module) for sanity checking
# ----------------------------------------------------------------------------
def _reference_loss(q, p, n=None, margin=0.5):
    def norm(x):
        x = x.astype(jnp.float32)
        nrm = jnp.sqrt(jnp.sum(x * x, axis=1, keepdims=True))
        return x / jnp.maximum(nrm, _EPS)

    qn, pn = norm(q), norm(p)
    if n is None:
        sim = qn @ pn.T
        B = q.shape[0]
        pos = jnp.diagonal(sim)[:, None]
        hinge = jnp.maximum(margin - pos + sim, 0.0)
        mask = ~jnp.eye(B, dtype=bool)
        return jnp.sum(jnp.where(mask, hinge, 0.0)) / (B * (B - 1))
    nn_ = norm(n)
    pos = jnp.sum(qn * pn, axis=1)
    neg = jnp.sum(qn * nn_, axis=1)
    return jnp.mean(jnp.maximum(margin - pos + neg, 0.0))


if __name__ == "__main__":
    margin = 0.5
    key = jax.random.PRNGKey(0)

    for B, D in [(8, 32), (5, 32)]:      # second case exercises padding/masking
        kq, kp, kn = jax.random.split(jax.random.fold_in(key, B), 3)
        query_emb = jax.random.normal(kq, (B, D), dtype=jnp.float32)
        pos_emb = jax.random.normal(kp, (B, D), dtype=jnp.float32)
        neg_emb = jax.random.normal(kn, (B, D), dtype=jnp.float32)

        # branch 1: in-batch negatives (neg_emb is None)
        loss_in_batch = contrastive_loss(query_emb, pos_emb, None, margin)
        jax.block_until_ready(loss_in_batch)

        # branch 2: explicit negatives
        loss_explicit = contrastive_loss(query_emb, pos_emb, neg_emb, margin)
        jax.block_until_ready(loss_explicit)

        ref1 = _reference_loss(query_emb, pos_emb, None, margin)
        ref2 = _reference_loss(query_emb, pos_emb, neg_emb, margin)
        assert jnp.allclose(loss_in_batch, ref1, atol=1e-5), (B, loss_in_batch, ref1)
        assert jnp.allclose(loss_explicit, ref2, atol=1e-5), (B, loss_explicit, ref2)

    print("KERNEL_OK")
</pallas_src>

<mosaic_0001>
module attributes {stable_mosaic.version = 11 : i64} {
  func.func @_prep_kernel(%arg0: i32, %arg1: memref<8x32xf32, #tpu.memory_space<vmem>>, %arg2: memref<8x32xf32, #tpu.memory_space<vmem>>, %arg3: memref<8x1xf32, #tpu.memory_space<vmem>>, %arg4: memref<8x1xf32, #tpu.memory_space<vmem>>) attributes {dimension_semantics = [#tpu.dimension_semantics<parallel>], iteration_bounds = array<i64: 1>, scalar_prefetch = 0 : i64, scratch_operands = 0 : i64, tpu.core_type = #tpu.core_type<tc>, window_params = [{transform_indices = @transform_0, window_bounds = array<i64: 8, 32>}, {transform_indices = @transform_1, window_bounds = array<i64: 8, 32>}, {transform_indices = @transform_2, window_bounds = array<i64: 8, 1>}, {transform_indices = @transform_3, window_bounds = array<i64: 8, 1>}]} {
    %c0 = arith.constant 0 : index
    %c0_0 = arith.constant 0 : index
    %0 = vector.load %arg1[%c0, %c0_0] : memref<8x32xf32, #tpu.memory_space<vmem>>, vector<8x32xf32>
    %c0_1 = arith.constant 0 : index
    %c0_2 = arith.constant 0 : index
    %1 = vector.load %arg2[%c0_1, %c0_2] : memref<8x32xf32, #tpu.memory_space<vmem>>, vector<8x32xf32>
    %2 = arith.mulf %0, %0 : vector<8x32xf32>
    %cst = arith.constant dense<0.000000e+00> : vector<8xf32>
    %3 = vector.multi_reduction <add>, %2, %cst [1] : vector<8x32xf32> to vector<8xf32>
    %4 = vector.shape_cast %3 : vector<8xf32> to vector<8x1xf32>
    %cst_3 = arith.constant 1.000000e-24 : f32
    %5 = vector.broadcast %cst_3 : f32 to vector<8x1xf32>
    %6 = arith.maximumf %4, %5 : vector<8x1xf32>
    %7 = math.rsqrt %6 : vector<8x1xf32>
    %8 = arith.mulf %1, %1 : vector<8x32xf32>
    %cst_4 = arith.constant dense<0.000000e+00> : vector<8xf32>
    %9 = vector.multi_reduction <add>, %8, %cst_4 [1] : vector<8x32xf32> to vector<8xf32>
    %10 = vector.shape_cast %9 : vector<8xf32> to vector<8x1xf32>
    %cst_5 = arith.constant 1.000000e-24 : f32
    %11 = vector.broadcast %cst_5 : f32 to vector<8x1xf32>
    %12 = arith.maximumf %10, %11 : vector<8x1xf32>
    %13 = math.rsqrt %12 : vector<8x1xf32>
    %c0_6 = arith.constant 0 : index
    %c0_7 = arith.constant 0 : index
    %14 = vector.load %arg3[%c0_6, %c0_7] : memref<8x1xf32, #tpu.memory_space<vmem>>, vector<8x1xf32>
    tpu.vector_store %arg3[%c0_6, %c0_7], %7 {strides = array<i32>} : memref<8x1xf32, #tpu.memory_space<vmem>>, vector<8x1xf32>,
    %15 = arith.mulf %0, %1 : vector<8x32xf32>
    %cst_8 = arith.constant dense<0.000000e+00> : vector<8xf32>
    %16 = vector.multi_reduction <add>, %15, %cst_8 [1] : vector<8x32xf32> to vector<8xf32>
    %17 = vector.shape_cast %16 : vector<8xf32> to vector<8x1xf32>
    %18 = arith.mulf %17, %7 : vector<8x1xf32>
    %19 = arith.mulf %18, %13 : vector<8x1xf32>
    %c0_9 = arith.constant 0 : index
    %c0_10 = arith.constant 0 : index
    %20 = vector.load %arg4[%c0_9, %c0_10] : memref<8x1xf32, #tpu.memory_space<vmem>>, vector<8x1xf32>
    tpu.vector_store %arg4[%c0_9, %c0_10], %19 {strides = array<i32>} : memref<8x1xf32, #tpu.memory_space<vmem>>, vector<8x1xf32>,
    return
  }
  func.func @transform_0(%arg0: i32) -> (i32, i32) {
    %c0_i32 = arith.constant 0 : i32
    %c0_i32_0 = arith.constant 0 : i32
    return %arg0, %c0_i32 : i32, i32
  }
  func.func @transform_1(%arg0: i32) -> (i32, i32) {
    %c0_i32 = arith.constant 0 : i32
    %c0_i32_0 = arith.constant 0 : i32
    return %arg0, %c0_i32 : i32, i32
  }
  func.func @transform_2(%arg0: i32) -> (i32, i32) {
    %c0_i32 = arith.constant 0 : i32
    %c0_i32_0 = arith.constant 0 : i32
    return %arg0, %c0_i32 : i32, i32
  }
  func.func @transform_3(%arg0: i32) -> (i32, i32) {
    %c0_i32 = arith.constant 0 : i32
    %c0_i32_0 = arith.constant 0 : i32
    return %arg0, %c0_i32 : i32, i32
  }
}

</mosaic_0001>

<llo_original>
// kernel: tpu_custom_call.1
$region0: #{tpu_custom_call.1}
  #allocation0 [shape = 'u32[]', space=smem, size = 0x4, offset = 0x4, fixed_abs, tag = 'smem constant byte address 0x4 - core index']
  #allocation1 [shape = 'u32[72,128]{1,0:T(1,128)}', space=vmem, size = 0x9000, scoped, tag = 'internal scratch']
  %s0 = inlined_call_operand.hbm [shape: f32[8,32], index: 0, kind: input, shape index: {}]
  %s1 = inlined_call_operand.hbm [shape: f32[8,32], index: 1, kind: input, shape index: {}]
  %s2 = inlined_call_operand.vmem [shape: f32[8,1], index: 2, kind: output, shape index: {0}]
  %s3 = inlined_call_operand.vmem [shape: f32[8,1], index: 3, kind: output, shape index: {1}]
  %4 = xla_tuple %s2, %s3
  %s5 = sld [smem:[#allocation0]]
  $region34: #{tpu_custom_call.1} parent=0
    _
  %s7 = ssub.s32 1, %s5
  %s8 = scalar_select 0, %s7, %s5
  $region1: #{tpu_custom_call.1} parent=0
    #allocation2 [shape = 'u8[4096]{0}', space=vmem, size = 0x1000, scoped, tag = 'input window, operand 0, single buffered']
    #allocation3 [shape = 's32[1]{0}', space=sflag, size = 0x4, scoped, tag = 'scoped memory for tpu_custom_call.1']
    #allocation4 [shape = 'u8[4096]{0}', space=vmem, size = 0x1000, scoped, tag = 'input window, operand 1, single buffered']
    #allocation5 [shape = 's32[1]{0}', space=sflag, size = 0x4, scoped, tag = 'scoped memory for tpu_custom_call.1']
    %9 = vsyncpa [#allocation3], 0
    %10 = vsyncpa [#allocation5], 0
    // Predicated region
    $region2: #{tpu_custom_call.1} parent=1 // pred_check
      _
    $region3: #{tpu_custom_call.1} parent=1 // pred_check_branch
      %12 = sbr.rel (0) target = $region5
    $region4: #{tpu_custom_call.1} parent=1 // pred_region
      %14 = vsyncadd [#allocation3], 0
      %s16 = sshll.u32 %s0, 4
      %s17 = int_to_ptr.hbm [resolvable:$true] %s16
      %s18 = sshll.u32 [#allocation2], 4
      %s19 = int_to_ptr.vmem [resolvable:$true] %s18
      %21 = dma.hbm_to_vmem [thread:$0]  %s17, 128, %s19, [#allocation3]
    $region5: #{tpu_custom_call.1} parent=1 // pred_fallthru
      _
    // Predicated region
    $region6: #{tpu_custom_call.1} parent=1 // pred_check
      _
    $region7: #{tpu_custom_call.1} parent=1 // pred_check_branch
      %23 = sbr.rel (0) target = $region9
    $region8: #{tpu_custom_call.1} parent=1 // pred_region
      %25 = vsyncadd [#allocation5], 0
      %s27 = sshll.u32 %s1, 4
      %s28 = int_to_ptr.hbm [resolvable:$true] %s27
      %s29 = sshll.u32 [#allocation4], 4
      %s30 = int_to_ptr.vmem [resolvable:$true] %s29
      %32 = dma.hbm_to_vmem [thread:$0]  %s28, 128, %s30, [#allocation5]
    $region9: #{tpu_custom_call.1} parent=1 // pred_fallthru
      _
    // Predicated region
    $region10: #{tpu_custom_call.1} parent=1 // pred_check
      _
    $region11: #{tpu_custom_call.1} parent=1 // pred_check_branch
      %34 = sbr.rel (0) target = $region13
    $region12: #{tpu_custom_call.1} parent=1 // pred_region
      %36 = dma.done [#allocation3], 128
    $region13: #{tpu_custom_call.1} parent=1 // pred_fallthru
      _
    // Predicated region
    $region14: #{tpu_custom_call.1} parent=1 // pred_check
      _
    $region15: #{tpu_custom_call.1} parent=1 // pred_check_branch
      %38 = sbr.rel (0) target = $region17
    $region16: #{tpu_custom_call.1} parent=1 // pred_region
      %40 = dma.done [#allocation5], 128
    $region17: #{tpu_custom_call.1} parent=1 // pred_fallthru
      _
    %v41 = vld [vmem:[#allocation2] sm:$0xff]
    %v42 = vld [vmem:[#allocation4] sm:$0xff]
    %v43 = vmul.f32 %v41, %v41
    %vm44 = vcmask 261120
    %v45 = vsel %vm44, %v43, 0.0
    %46 = vadd.xlane.f32.xlu0 %v45
    %v47 = vpop.xlane.xlu0 %46
    %v48 = vmax.f32 %v47, 1e-24
    %v49 = vrsqrt.pop %v48
    %v50 = vmul.f32 %v49, %v48
    %v51 = vmul.f32 %v50, %v49
    %v52 = vmul.f32 0.5, %v51
    %v53 = vsub.f32 1.5, %v52
    %v54 = vmul.f32 %v49, %v53
    %vm55 = vweird.f32 %v48
    %vm56 = vweird.f32 %v49
    %vm57 = vmor %vm55, %vm56
    %v58 = vsel %vm57, %v49, %v54
    %v59 = vmul.f32 %v42, %v42
    %v60 = vsel %vm44, %v59, 0.0
    %61 = vadd.xlane.f32.xlu0 %v60
    %v62 = vpop.xlane.xlu0 %61
    %v63 = vmax.f32 %v62, 1e-24
    %v64 = vrsqrt.pop %v63
    %v65 = vmul.f32 %v64, %v63
    %v66 = vmul.f32 %v65, %v64
    %v67 = vmul.f32 0.5, %v66
    %v68 = vsub.f32 1.5, %v67
    %v69 = vmul.f32 %v64, %v68
    %vm70 = vweird.f32 %v63
    %vm71 = vweird.f32 %v64
    %vm72 = vmor %vm70, %vm71
    %v73 = vsel %vm72, %v64, %v69
    %vm74 = vcmask 7168
    %75 = vst.msk [vmem:[%s2] sm:$0xff] %vm74, %v58
    %v76 = vmul.f32 %v41, %v42
    %v77 = vsel %vm44, %v76, 0.0
    %78 = vadd.xlane.f32.xlu0 %v77
    %v79 = vpop.xlane.xlu0 %78
    %v80 = vmul.f32 %v79, %v58
    %v81 = vmul.f32 %v80, %v73
    %82 = vst.msk [vmem:[%s3] sm:$0xff] %vm74, %v81
    // Predicated region
    $region18: #{tpu_custom_call.1} parent=1 // pred_check
      _
    $region19: #{tpu_custom_call.1} parent=1 // pred_check_branch
      %84 = sbr.rel (0) target = $region21
    $region20: #{tpu_custom_call.1} parent=1 // pred_region
      _
    $region21: #{tpu_custom_call.1} parent=1 // pred_fallthru
      _
    // Predicated region
    $region22: #{tpu_custom_call.1} parent=1 // pred_check
      _
    $region23: #{tpu_custom_call.1} parent=1 // pred_check_branch
      %86 = sbr.rel (0) target = $region25
    $region24: #{tpu_custom_call.1} parent=1 // pred_region
      _
    $region25: #{tpu_custom_call.1} parent=1 // pred_fallthru
      _
    // Predicated region
    $region26: #{tpu_custom_call.1} parent=1 // pred_check
      _
    $region27: #{tpu_custom_call.1} parent=1 // pred_check_branch
      %88 = sbr.rel (0) target = $region29
    $region28: #{tpu_custom_call.1} parent=1 // pred_region
      _
    $region29: #{tpu_custom_call.1} parent=1 // pred_fallthru
      _
    // Predicated region
    $region30: #{tpu_custom_call.1} parent=1 // pred_check
      _
    $region31: #{tpu_custom_call.1} parent=1 // pred_check_branch
      %90 = sbr.rel (0) target = $region33
    $region32: #{tpu_custom_call.1} parent=1 // pred_region
      _
    $region33: #{tpu_custom_call.1} parent=1 // pred_fallthru
      _
    %91 = vsyncpa [#allocation3], 1
    %92 = vsyncpa [#allocation5], 1

</llo_original>
